<compile_context>
chip_gen: v6e
topology: v6e:2x2x1
jax: 0.10.0
libtpu: 0.0.40
codegen_flags: <defaults>
</compile_context>

<pallas_src>
import jax
import jax.numpy as jnp
from jax import lax
from jax.experimental import pallas as pl
from jax.experimental.pallas import tpu as pltpu


# ----------------------------------------------------------------------------
# helpers
# ----------------------------------------------------------------------------
def _round_up(a, b):
    return (a + b - 1) // b * b


def _default_vmem_limit_bytes():
    # v5e/v6e: ~102 MiB of 128; v7x: ~51 MiB of 64. Fallback is conservative.
    try:
        cap = int(pltpu.get_tpu_info().vmem_capacity_bytes)
        return int(cap * 0.8)
    except Exception:
        return 48 * 1024 * 1024


# ----------------------------------------------------------------------------
# Kernel 1: fully fused projection + mask + log-softmax (single vocab tile)
# ----------------------------------------------------------------------------
def _fused_kernel(x_ref, fo_ref, wt_ref, b_ref, o_ref):
    # x_ref : (1, Sb, D)   activations (compute dtype, e.g. bf16)
    # fo_ref: (1, 1, Vp)   first-occurrence index per vocab id (int32, -1 => always masked)
    # wt_ref: (D, Vp)      pre-transposed projection weight (compute dtype)
    # b_ref : (1, Vp)      bias (f32)
    # o_ref : (1, Sb, Vp)  log-probs output
    si = pl.program_id(1)
    sb = x_ref.shape[1]

    logits = jnp.dot(x_ref[0], wt_ref[...], preferred_element_type=jnp.float32)
    logits = logits + b_ref[...]                                    # (Sb, Vp) f32

    row_idx = lax.broadcasted_iota(jnp.int32, (sb, 1), 0) + si * sb  # global row i
    masked = fo_ref[0] <= row_idx                                    # (Sb, Vp)
    logits = jnp.where(masked, -jnp.inf, logits)

    m = jnp.max(logits, axis=-1, keepdims=True)
    shifted = logits - m
    lse = jnp.log(jnp.sum(jnp.exp(shifted), axis=-1, keepdims=True))
    o_ref[0] = (shifted - lse).astype(o_ref.dtype)


def _fused_call(B, Sp, D, Vp, Sb, out_dtype, vmem_limit_bytes, single_buffer_consts):
    def const_spec(shape):
        if single_buffer_consts:
            # Constant index map -> fetched once; single-buffer to halve VMEM.
            return pl.BlockSpec(shape, lambda b, s: (0, 0),
                                pipeline_mode=pl.Buffered(1))
        return pl.BlockSpec(shape, lambda b, s: (0, 0))

    return pl.pallas_call(
        _fused_kernel,
        out_shape=jax.ShapeDtypeStruct((B, Sp, Vp), out_dtype),
        grid_spec=pltpu.PrefetchScalarGridSpec(
            num_scalar_prefetch=0,
            grid=(B, Sp // Sb),
            in_specs=[
                pl.BlockSpec((1, Sb, D), lambda b, s: (b, s, 0)),   # x tile
                pl.BlockSpec((1, 1, Vp), lambda b, s: (b, 0, 0)),   # first_occ row
                const_spec((D, Vp)),                                # W^T (constant)
                const_spec((1, Vp)),                                # bias (constant)
            ],
            out_specs=pl.BlockSpec((1, Sb, Vp), lambda b, s: (b, s, 0)),
        ),
        compiler_params=pltpu.CompilerParams(
            dimension_semantics=("parallel", "parallel"),
            vmem_limit_bytes=vmem_limit_bytes,
        ),
    )


# ----------------------------------------------------------------------------
# Kernel 2a/2b: vocab-tiled streaming path (online max / sum-exp, then normalize)
# ----------------------------------------------------------------------------
def _proj_mask_kernel(x_ref, fo_ref, wt_ref, b_ref, logits_ref, lse_ref, m_sc, l_sc):
    # grid = (B, S_tiles, V_tiles); V innermost, "arbitrary".
    si = pl.program_id(1)
    vi = pl.program_id(2)
    sb = x_ref.shape[1]

    @pl.when(vi == 0)
    def _():
        # Finite "neutral" max avoids (-inf) - (-inf) = NaN when a whole tile is masked.
        m_sc[...] = jnp.full_like(m_sc, -1e30)
        l_sc[...] = jnp.zeros_like(l_sc)

    logits = jnp.dot(x_ref[0], wt_ref[...], preferred_element_type=jnp.float32)
    logits = logits + b_ref[...]                                    # (Sb, Tv) f32

    row_idx = lax.broadcasted_iota(jnp.int32, (sb, 1), 0) + si * sb
    masked = fo_ref[0] <= row_idx
    logits = jnp.where(masked, -jnp.inf, logits)

    m_prev = m_sc[...]
    m_new = jnp.maximum(m_prev, jnp.max(logits, axis=-1, keepdims=True))
    l_sc[...] = (l_sc[...] * jnp.exp(m_prev - m_new)
                 + jnp.sum(jnp.exp(logits - m_new), axis=-1, keepdims=True))
    m_sc[...] = m_new

    logits_ref[0] = logits                                          # masked, unnormalized

    @pl.when(vi == pl.num_programs(2) - 1)
    def _():
        lse_ref[0] = m_sc[...] + jnp.log(l_sc[...])


def _normalize_kernel(logits_ref, lse_ref, o_ref):
    o_ref[0] = (logits_ref[0] - lse_ref[0]).astype(o_ref.dtype)


def _stream_calls(B, Sp, D, Vp, Sb, Tv, out_dtype, vmem_limit_bytes):
    grid = (B, Sp // Sb, Vp // Tv)
    proj = pl.pallas_call(
        _proj_mask_kernel,
        out_shape=(jax.ShapeDtypeStruct((B, Sp, Vp), jnp.float32),
                   jax.ShapeDtypeStruct((B, Sp, 1), jnp.float32)),
        grid_spec=pltpu.PrefetchScalarGridSpec(
            num_scalar_prefetch=0,
            grid=grid,
            in_specs=[
                pl.BlockSpec((1, Sb, D), lambda b, s, v: (b, s, 0)),   # x tile (revisited over v)
                pl.BlockSpec((1, 1, Tv), lambda b, s, v: (b, 0, v)),   # first_occ slice
                pl.BlockSpec((D, Tv), lambda b, s, v: (0, v)),         # W^T vocab slab
                pl.BlockSpec((1, Tv), lambda b, s, v: (0, v)),         # bias slab
            ],
            out_specs=[
                pl.BlockSpec((1, Sb, Tv), lambda b, s, v: (b, s, v)),  # masked logits
                pl.BlockSpec((1, Sb, 1), lambda b, s, v: (b, s, 0)),   # per-row lse
            ],
            scratch_shapes=[pltpu.VMEM((Sb, 1), jnp.float32),          # running max
                            pltpu.VMEM((Sb, 1), jnp.float32)],         # running sum-exp
        ),
        compiler_params=pltpu.CompilerParams(
            dimension_semantics=("parallel", "parallel", "arbitrary"),
            vmem_limit_bytes=vmem_limit_bytes,
        ),
    )
    norm = pl.pallas_call(
        _normalize_kernel,
        out_shape=jax.ShapeDtypeStruct((B, Sp, Vp), out_dtype),
        grid_spec=pltpu.PrefetchScalarGridSpec(
            num_scalar_prefetch=0,
            grid=grid,
            in_specs=[
                pl.BlockSpec((1, Sb, Tv), lambda b, s, v: (b, s, v)),
                pl.BlockSpec((1, Sb, 1), lambda b, s, v: (b, s, 0)),
            ],
            out_specs=pl.BlockSpec((1, Sb, Tv), lambda b, s, v: (b, s, v)),
        ),
        compiler_params=pltpu.CompilerParams(
            dimension_semantics=("parallel", "parallel", "parallel"),
            vmem_limit_bytes=vmem_limit_bytes,
        ),
    )
    return proj, norm


# ----------------------------------------------------------------------------
# wrapper
# ----------------------------------------------------------------------------
def generator_forward(x, y_decoder, weight, bias, *,
                      seq_block=256, vocab_block=2048,
                      compute_dtype=jnp.bfloat16, out_dtype=jnp.float32,
                      vmem_limit_bytes=None):
    """x: (B, S, D).  y_decoder: (B, S) int.  weight: (V, D).  bias: (V,)."""
    B, S, D = x.shape
    V = weight.shape[0]
    assert weight.shape == (V, D)
    assert bias.shape == (V,)
    assert y_decoder.shape == (B, S)
    assert V >= 2

    if vmem_limit_bytes is None:
        vmem_limit_bytes = _default_vmem_limit_bytes()

    # --- tile sizes & padded extents (fixed large tiles; no tiny-MXU fallback) ---
    seq_block = max(8, (int(seq_block) // 8) * 8)
    vocab_block = max(128, (int(vocab_block) // 128) * 128)
    Sp = _round_up(S, 8)
    if Sp <= seq_block:
        Sb = Sp
    else:
        Sb = seq_block
        Sp = _round_up(S, Sb)
    Vp = _round_up(V, 128)
    if Vp <= vocab_block:
        Tv = Vp
    else:
        Tv = vocab_block
        Vp = _round_up(V, Tv)
    n_v = Vp // Tv

    # --- host-side prep: transpose/cast/pad weight & activations ---
    xp = jnp.asarray(x, dtype=jnp.float32)
    if Sp != S:
        xp = jnp.pad(xp, ((0, 0), (0, Sp - S), (0, 0)))
    xp = xp.astype(compute_dtype)

    wt = jnp.asarray(weight, dtype=jnp.float32).T                    # (D, V)
    if Vp != V:
        wt = jnp.pad(wt, ((0, 0), (0, Vp - V)))
    wt = wt.astype(compute_dtype)

    b2 = jnp.asarray(bias, dtype=jnp.float32)
    if Vp != V:
        b2 = jnp.pad(b2, ((0, Vp - V),))
    b2 = b2.reshape(1, Vp)

    # --- precomputed mask: first_occ[b, v] = min{ j : y[b, j] == v } ---
    # tokens 0/1 and padded lanes get -1 => always masked.
    y = jnp.asarray(y_decoder, dtype=jnp.int32)
    BIG = jnp.int32(2 ** 30)
    pos = jnp.broadcast_to(jnp.arange(S, dtype=jnp.int32)[None, :], (B, S))
    bidx = jnp.broadcast_to(jnp.arange(B, dtype=jnp.int32)[:, None], (B, S))
    first_occ = jnp.full((B, V), BIG, dtype=jnp.int32)
    first_occ = first_occ.at[bidx, y].min(pos)
    first_occ = first_occ.at[:, :2].set(-1)
    if Vp != V:
        first_occ = jnp.pad(first_occ, ((0, 0), (0, Vp - V)), constant_values=-1)
    first_occ = first_occ.reshape(B, 1, Vp)

    if n_v == 1:
        try:
            out = _fused_call(B, Sp, D, Vp, Sb, out_dtype, vmem_limit_bytes,
                              single_buffer_consts=True)(xp, first_occ, wt, b2)
        except Exception:
            # Fallback if pipeline_mode / Buffered(1) is unsupported on this jax build.
            out = _fused_call(B, Sp, D, Vp, Sb, out_dtype, vmem_limit_bytes,
                              single_buffer_consts=False)(xp, first_occ, wt, b2)
    else:
        proj, norm = _stream_calls(B, Sp, D, Vp, Sb, Tv, out_dtype, vmem_limit_bytes)
        logits, lse = proj(xp, first_occ, wt, b2)
        out = norm(logits, lse)

    if Sp != S or Vp != V:
        out = out[:, :S, :V]
    return out


# ----------------------------------------------------------------------------
# reference + demo
# ----------------------------------------------------------------------------
def _reference_forward(x, y_decoder, weight, bias):
    logits = jnp.einsum("bsd,vd->bsv", x, weight,
                        precision=lax.Precision.HIGHEST) + bias
    V = weight.shape[0]
    vocab_ids = jnp.arange(V)
    eq = (y_decoder[:, :, None] == vocab_ids[None, None, :])
    counts = jnp.cumsum(eq.astype(jnp.int32), axis=1)          # seen at j <= i
    masked = (counts > 0) | (vocab_ids[None, None, :] < 2)
    logits = jnp.where(masked, -jnp.inf, logits)
    return jax.nn.log_softmax(logits, axis=-1)


if __name__ == "__main__":
    key = jax.random.PRNGKey(0)

    def run_case(batch, seq, dim_model, vocab, **kw):
        kx, kw_, kb, ky = jax.random.split(jax.random.fold_in(key, 1000 * vocab + seq), 4)
        x = jax.random.normal(kx, (batch, seq, dim_model), dtype=jnp.float32)
        w = 0.05 * jax.random.normal(kw_, (vocab, dim_model), dtype=jnp.float32)
        b = 0.05 * jax.random.normal(kb, (vocab,), dtype=jnp.float32)
        y = jax.random.randint(ky, (batch, seq), 0, vocab, dtype=jnp.int32)

        out = jax.block_until_ready(generator_forward(x, y, w, b, **kw))
        ref = _reference_forward(x, y, w, b)

        assert out.shape == (batch, seq, vocab)
        out32 = out.astype(jnp.float32)
        oinf = jnp.isneginf(out32)
        rinf = jnp.isneginf(ref)
        assert bool(jnp.all(oinf == rinf)), "masked (-inf) positions do not match"
        ok = jnp.allclose(jnp.where(rinf, 0.0, out32),
                          jnp.where(rinf, 0.0, ref),
                          atol=3e-2, rtol=3e-2)
        assert bool(ok), "finite log-prob values do not match reference"

    # Case 1: small module shapes -> fused single-vocab-tile path.
    run_case(2, 8, 32, 128)
    # Case 2: ragged seq + multiple vocab tiles -> streaming online-lse path.
    run_case(2, 20, 32, 384, seq_block=8, vocab_block=128)

    print("KERNEL_OK")
</pallas_src>

<mosaic_0001>
module attributes {stable_mosaic.version = 11 : i64} {
  func.func @_fused_kernel(%arg0: i32, %arg1: i32, %arg2: memref<1x8x32xbf16, #tpu.memory_space<vmem>>, %arg3: memref<1x1x128xi32, #tpu.memory_space<vmem>>, %arg4: memref<32x128xbf16, #tpu.memory_space<vmem>>, %arg5: memref<1x128xf32, #tpu.memory_space<vmem>>, %arg6: memref<1x8x128xf32, #tpu.memory_space<vmem>>) attributes {dimension_semantics = [#tpu.dimension_semantics<parallel>, #tpu.dimension_semantics<parallel>], iteration_bounds = array<i64: 2, 1>, scalar_prefetch = 0 : i64, scratch_operands = 0 : i64, tpu.core_type = #tpu.core_type<tc>, window_params = [{transform_indices = @transform_0, window_bounds = array<i64: 1, 8, 32>}, {transform_indices = @transform_1, window_bounds = array<i64: 1, 1, 128>}, {pipeline_mode = #tpu.pipeline_mode<synchronous>, transform_indices = @transform_2, window_bounds = array<i64: 32, 128>}, {pipeline_mode = #tpu.pipeline_mode<synchronous>, transform_indices = @transform_3, window_bounds = array<i64: 1, 128>}, {transform_indices = @transform_4, window_bounds = array<i64: 1, 8, 128>}]} {
    %c0 = arith.constant 0 : index
    %c0_0 = arith.constant 0 : index
    %c0_1 = arith.constant 0 : index
    %0 = vector.load %arg2[%c0, %c0_0, %c0_1] : memref<1x8x32xbf16, #tpu.memory_space<vmem>>, vector<1x8x32xbf16>
    %1 = vector.shape_cast %0 : vector<1x8x32xbf16> to vector<8x32xbf16>
    %c0_2 = arith.constant 0 : index
    %c0_3 = arith.constant 0 : index
    %2 = vector.load %arg4[%c0_2, %c0_3] : memref<32x128xbf16, #tpu.memory_space<vmem>>, vector<32x128xbf16>
    %cst = arith.constant dense<0.000000e+00> : vector<8x128xf32>
    %3 = tpu.matmul %1, %2, %cst {dimension_numbers = #tpu.dot_dimension_numbers<[1], [0], [0], [1], [0, 0, 1, 1], [], []>} : vector<8x32xbf16>, vector<32x128xbf16>, vector<8x128xf32> -> vector<8x128xf32>
    %c0_4 = arith.constant 0 : index
    %c0_5 = arith.constant 0 : index
    %4 = vector.load %arg5[%c0_4, %c0_5] : memref<1x128xf32, #tpu.memory_space<vmem>>, vector<1x128xf32>
    %5 = vector.broadcast %4 : vector<1x128xf32> to vector<8x128xf32>
    %6 = arith.addf %3, %5 : vector<8x128xf32>
    %7 = tpu.iota {dimensions = array<i32: 0>} : vector<8x1xi32>
    %c8_i32 = arith.constant 8 : i32
    %8 = arith.muli %arg1, %c8_i32 : i32
    %9 = vector.broadcast %8 : i32 to vector<8x1xi32>
    %10 = arith.addi %7, %9 : vector<8x1xi32>
    %c0_6 = arith.constant 0 : index
    %c0_7 = arith.constant 0 : index
    %c0_8 = arith.constant 0 : index
    %11 = vector.load %arg3[%c0_6, %c0_7, %c0_8] : memref<1x1x128xi32, #tpu.memory_space<vmem>>, vector<1x1x128xi32>
    %12 = vector.shape_cast %11 : vector<1x1x128xi32> to vector<1x128xi32>
    %13 = vector.broadcast %12 : vector<1x128xi32> to vector<8x128xi32>
    %14 = vector.broadcast %10 : vector<8x1xi32> to vector<8x128xi32>
    %15 = arith.cmpi sle, %13, %14 : vector<8x128xi32>
    %cst_9 = arith.constant 0xFF800000 : f32
    %16 = vector.broadcast %cst_9 : f32 to vector<8x128xf32>
    %17 = arith.select %15, %16, %6 : vector<8x128xi1>, vector<8x128xf32>
    %cst_10 = arith.constant dense<0xFF800000> : vector<8xf32>
    %18 = vector.multi_reduction <maximumf>, %17, %cst_10 [1] : vector<8x128xf32> to vector<8xf32>
    %19 = vector.shape_cast %18 : vector<8xf32> to vector<8x1xf32>
    %20 = vector.broadcast %19 : vector<8x1xf32> to vector<8x128xf32>
    %21 = arith.subf %17, %20 : vector<8x128xf32>
    %22 = math.exp %21 : vector<8x128xf32>
    %cst_11 = arith.constant dense<0.000000e+00> : vector<8xf32>
    %23 = vector.multi_reduction <add>, %22, %cst_11 [1] : vector<8x128xf32> to vector<8xf32>
    %24 = vector.shape_cast %23 : vector<8xf32> to vector<8x1xf32>
    %25 = math.log %24 : vector<8x1xf32>
    %26 = vector.broadcast %25 : vector<8x1xf32> to vector<8x128xf32>
    %27 = arith.subf %21, %26 : vector<8x128xf32>
    %c0_12 = arith.constant 0 : index
    %c0_13 = arith.constant 0 : index
    %c0_14 = arith.constant 0 : index
    %28 = vector.load %arg6[%c0_12, %c0_13, %c0_14] : memref<1x8x128xf32, #tpu.memory_space<vmem>>, vector<1x8x128xf32>
    %29 = vector.shape_cast %28 : vector<1x8x128xf32> to vector<8x128xf32>
    %30 = vector.shape_cast %27 : vector<8x128xf32> to vector<1x8x128xf32>
    tpu.vector_store %arg6[%c0_12, %c0_13, %c0_14], %30 {strides = array<i32>} : memref<1x8x128xf32, #tpu.memory_space<vmem>>, vector<1x8x128xf32>,
    return
  }
  func.func @transform_0(%arg0: i32, %arg1: i32) -> (i32, i32, i32) {
    %c0_i32 = arith.constant 0 : i32
    %c0_i32_0 = arith.constant 0 : i32
    return %arg0, %arg1, %c0_i32 : i32, i32, i32
  }
  func.func @transform_1(%arg0: i32, %arg1: i32) -> (i32, i32, i32) {
    %c0_i32 = arith.constant 0 : i32
    %c0_i32_0 = arith.constant 0 : i32
    %c0_i32_1 = arith.constant 0 : i32
    return %arg0, %c0_i32, %c0_i32_0 : i32, i32, i32
  }
  func.func @transform_2(%arg0: i32, %arg1: i32) -> (i32, i32) {
    %c0_i32 = arith.constant 0 : i32
    %c0_i32_0 = arith.constant 0 : i32
    %c0_i32_1 = arith.constant 0 : i32
    return %c0_i32, %c0_i32_0 : i32, i32
  }
  func.func @transform_3(%arg0: i32, %arg1: i32) -> (i32, i32) {
    %c0_i32 = arith.constant 0 : i32
    %c0_i32_0 = arith.constant 0 : i32
    %c0_i32_1 = arith.constant 0 : i32
    return %c0_i32, %c0_i32_0 : i32, i32
  }
  func.func @transform_4(%arg0: i32, %arg1: i32) -> (i32, i32, i32) {
    %c0_i32 = arith.constant 0 : i32
    %c0_i32_0 = arith.constant 0 : i32
    return %arg0, %arg1, %c0_i32 : i32, i32, i32
  }
}

module attributes {stable_mosaic.version = 11 : i64} {
  func.func @_fused_kernel(%arg0: i32, %arg1: i32, %arg2: memref<1x8x32xbf16, #tpu.memory_space<vmem>>, %arg3: memref<1x1x128xi32, #tpu.memory_space<vmem>>, %arg4: memref<32x128xbf16, #tpu.memory_space<vmem>>, %arg5: memref<1x128xf32, #tpu.memory_space<vmem>>, %arg6: memref<1x8x128xf32, #tpu.memory_space<vmem>>) attributes {dimension_semantics = [#tpu.dimension_semantics<parallel>, #tpu.dimension_semantics<parallel>], iteration_bounds = array<i64: 2, 1>, scalar_prefetch = 0 : i64, scratch_operands = 0 : i64, tpu.core_type = #tpu.core_type<tc>, window_params = [{transform_indices = @transform_0, window_bounds = array<i64: 1, 8, 32>}, {transform_indices = @transform_1, window_bounds = array<i64: 1, 1, 128>}, {pipeline_mode = #tpu.pipeline_mode<synchronous>, transform_indices = @transform_2, window_bounds = array<i64: 32, 128>}, {pipeline_mode = #tpu.pipeline_mode<synchronous>, transform_indices = @transform_3, window_bounds = array<i64: 1, 128>}, {transform_indices = @transform_4, window_bounds = array<i64: 1, 8, 128>}]} {
    %c0 = arith.constant 0 : index
    %c0_0 = arith.constant 0 : index
    %c0_1 = arith.constant 0 : index
    %0 = vector.load %arg2[%c0, %c0_0, %c0_1] : memref<1x8x32xbf16, #tpu.memory_space<vmem>>, vector<1x8x32xbf16>
    %1 = vector.shape_cast %0 : vector<1x8x32xbf16> to vector<8x32xbf16>
    %c0_2 = arith.constant 0 : index
    %c0_3 = arith.constant 0 : index
    %2 = vector.load %arg4[%c0_2, %c0_3] : memref<32x128xbf16, #tpu.memory_space<vmem>>, vector<32x128xbf16>
    %cst = arith.constant dense<0.000000e+00> : vector<8x128xf32>
    %3 = tpu.matmul %1, %2, %cst {dimension_numbers = #tpu.dot_dimension_numbers<[1], [0], [0], [1], [0, 0, 1, 1], [], []>} : vector<8x32xbf16>, vector<32x128xbf16>, vector<8x128xf32> -> vector<8x128xf32>
    %c0_4 = arith.constant 0 : index
    %c0_5 = arith.constant 0 : index
    %4 = vector.load %arg5[%c0_4, %c0_5] : memref<1x128xf32, #tpu.memory_space<vmem>>, vector<1x128xf32>
    %5 = vector.broadcast %4 : vector<1x128xf32> to vector<8x128xf32>
    %6 = arith.addf %3, %5 : vector<8x128xf32>
    %7 = tpu.iota {dimensions = array<i32: 0>} : vector<8x1xi32>
    %c8_i32 = arith.constant 8 : i32
    %8 = arith.muli %arg1, %c8_i32 : i32
    %9 = vector.broadcast %8 : i32 to vector<8x1xi32>
    %10 = arith.addi %7, %9 : vector<8x1xi32>
    %c0_6 = arith.constant 0 : index
    %c0_7 = arith.constant 0 : index
    %c0_8 = arith.constant 0 : index
    %11 = vector.load %arg3[%c0_6, %c0_7, %c0_8] : memref<1x1x128xi32, #tpu.memory_space<vmem>>, vector<1x1x128xi32>
    %12 = vector.shape_cast %11 : vector<1x1x128xi32> to vector<1x128xi32>
    %13 = vector.broadcast %12 : vector<1x128xi32> to vector<8x128xi32>
    %14 = vector.broadcast %10 : vector<8x1xi32> to vector<8x128xi32>
    %15 = arith.cmpi sle, %13, %14 : vector<8x128xi32>
    %cst_9 = arith.constant 0xFF800000 : f32
    %16 = vector.broadcast %cst_9 : f32 to vector<8x128xf32>
    %17 = arith.select %15, %16, %6 : vector<8x128xi1>, vector<8x128xf32>
    %cst_10 = arith.constant dense<0xFF800000> : vector<8xf32>
    %18 = vector.multi_reduction <maximumf>, %17, %cst_10 [1] : vector<8x128xf32> to vector<8xf32>
    %19 = vector.shape_cast %18 : vector<8xf32> to vector<8x1xf32>
    %20 = vector.broadcast %19 : vector<8x1xf32> to vector<8x128xf32>
    %21 = arith.subf %17, %20 : vector<8x128xf32>
    %22 = math.exp %21 : vector<8x128xf32>
    %cst_11 = arith.constant dense<0.000000e+00> : vector<8xf32>
    %23 = vector.multi_reduction <add>, %22, %cst_11 [1] : vector<8x128xf32> to vector<8xf32>
    %24 = vector.shape_cast %23 : vector<8xf32> to vector<8x1xf32>
    %25 = math.log %24 : vector<8x1xf32>
    %26 = vector.broadcast %25 : vector<8x1xf32> to vector<8x128xf32>
    %27 = arith.subf %21, %26 : vector<8x128xf32>
    %c0_12 = arith.constant 0 : index
    %c0_13 = arith.constant 0 : index
    %c0_14 = arith.constant 0 : index
    %28 = vector.load %arg6[%c0_12, %c0_13, %c0_14] : memref<1x8x128xf32, #tpu.memory_space<vmem>>, vector<1x8x128xf32>
    %29 = vector.shape_cast %28 : vector<1x8x128xf32> to vector<8x128xf32>
    %30 = vector.shape_cast %27 : vector<8x128xf32> to vector<1x8x128xf32>
    tpu.vector_store %arg6[%c0_12, %c0_13, %c0_14], %30 {strides = array<i32>} : memref<1x8x128xf32, #tpu.memory_space<vmem>>, vector<1x8x128xf32>,
    return
  }
  func.func @transform_0(%arg0: i32, %arg1: i32) -> (i32, i32, i32) {
    %c0_i32 = arith.constant 0 : i32
    %c0_i32_0 = arith.constant 0 : i32
    return %arg0, %arg1, %c0_i32 : i32, i32, i32
  }
  func.func @transform_1(%arg0: i32, %arg1: i32) -> (i32, i32, i32) {
    %c0_i32 = arith.constant 0 : i32
    %c0_i32_0 = arith.constant 0 : i32
    %c0_i32_1 = arith.constant 0 : i32
    return %arg0, %c0_i32, %c0_i32_0 : i32, i32, i32
  }
  func.func @transform_2(%arg0: i32, %arg1: i32) -> (i32, i32) {
    %c0_i32 = arith.constant 0 : i32
    %c0_i32_0 = arith.constant 0 : i32
    %c0_i32_1 = arith.constant 0 : i32
    return %c0_i32, %c0_i32_0 : i32, i32
  }
  func.func @transform_3(%arg0: i32, %arg1: i32) -> (i32, i32) {
    %c0_i32 = arith.constant 0 : i32
    %c0_i32_0 = arith.constant 0 : i32
    %c0_i32_1 = arith.constant 0 : i32
    return %c0_i32, %c0_i32_0 : i32, i32
  }
  func.func @transform_4(%arg0: i32, %arg1: i32) -> (i32, i32, i32) {
    %c0_i32 = arith.constant 0 : i32
    %c0_i32_0 = arith.constant 0 : i32
    return %arg0, %arg1, %c0_i32 : i32, i32, i32
  }
}

</mosaic_0001>

<llo_original>
// kernel: tpu_custom_call.1
$region0: #{tpu_custom_call.1}
  #allocation0 [shape = 'u32[]', space=smem, size = 0x4, offset = 0x4, fixed_abs, tag = 'smem constant byte address 0x4 - core index']
  #allocation1 [shape = 'u32[144,128]{1,0:T(1,128)}', space=vmem, size = 0x12000, scoped, tag = 'internal scratch']
  %s0 = inlined_call_operand.hbm [shape: bf16[2,8,32], index: 0, kind: input, shape index: {}]
  %s1 = inlined_call_operand.hbm [shape: s32[2,1,128], index: 1, kind: input, shape index: {}]
  %s2 = inlined_call_operand.hbm [shape: bf16[32,128], index: 2, kind: input, shape index: {}]
  %s3 = inlined_call_operand.vmem [shape: f32[1,128], index: 3, kind: input, shape index: {}]
  %s4 = inlined_call_operand.hbm [shape: f32[2,8,128], index: 4, kind: output, shape index: {}]
  %s5 = sld [smem:[#allocation0]]
  $region61: #{tpu_custom_call.1} parent=0
    _
  %s7 = ssub.s32 1, %s5
  %s8 = scalar_select 0, %s7, %s5
  $region1: #{tpu_custom_call.1} parent=0
    #allocation2 [shape = 'u8[4096]{0}', space=vmem, size = 0x1000, scoped, tag = 'input window, operand 0']
    #allocation3 [shape = 's32[2]{0}', space=sflag, size = 0x8, scoped, tag = 'scoped memory for tpu_custom_call.1']
    #allocation4 [shape = 's32[2]{0}', space=sflag, size = 0x8, scoped, tag = 'scoped memory for tpu_custom_call.1']
    #allocation5 [shape = 'u8[1024]{0}', space=vmem, size = 0x400, scoped, tag = 'input window, operand 1']
    #allocation6 [shape = 's32[2]{0}', space=sflag, size = 0x8, scoped, tag = 'scoped memory for tpu_custom_call.1']
    #allocation7 [shape = 'u8[8192]{0}', space=vmem, size = 0x2000, scoped, tag = 'input window, operand 2, single buffered']
    #allocation8 [shape = 'u8[8192]{0}', space=vmem, size = 0x2000, scoped, tag = 'output window, operand 0']
    %9 = vsyncpa [#allocation3], 0
    %s10 = scalar_lea.sflag [#allocation3], 1
    %11 = vsyncpa %s10, 0
    %12 = vsyncpa [#allocation6], 0
    %s13 = scalar_lea.sflag [#allocation6], 1
    %14 = vsyncpa %s13, 0
    %15 = vsyncpa [#allocation4], 0
    %s16 = scalar_lea.sflag [#allocation4], 1
    %17 = vsyncpa %s16, 0
    loop: start=0, step=1, limit=4
    $region2: #{tpu_custom_call.1} parent=1 // loop_pre_header
      _
    $region3: #{tpu_custom_call.1} parent=1 // loop_header
      %s19 = sphi 0, %s23
      %p20 = scmp.ge.s32.totalorder %s19, 4
      %s26 = sphi 0, %s38
      %s27 = sphi 0, %s34
      %s28 = sphi 0, %s26
      %s29 = sphi 0, %s27
      %s30 = sphi 0, %s28
      %s31 = sphi 0, %s29
      %s43 = sphi 0, %s45
      %s46 = sphi 0, %s43
      %s47 = sphi 0, %s46
      %s63 = sphi 0, %s47
      %s69 = sphi 0, %s71
      %s72 = sphi 0, %s69
      %s73 = sphi 0, %s72
      %s89 = sphi 0, %s73
      %s93 = sphi 0, %s93
      %s95 = sphi 0, %s93
      %s96 = sphi 0, %s95
      %s110 = sphi 0, %s96
      %s114 = sphi 0, %s114
      %s116 = sphi 0, %s114
      %s117 = sphi 0, %s116
      %s131 = sphi 0, %s117
      %s139 = sphi 0, %s141
      %s142 = sphi 0, %s139
      %s143 = sphi 0, %s142
      %s159 = sphi 0, %s143
    $region4: #{tpu_custom_call.1} parent=1 // loop_header_branch
      %22 = sbr.rel (%p20) target = $region8
    $region5: #{tpu_custom_call.1} parent=1 // loop_body
      %s24 = ssub.s32 %s19, 1
      %s25 = ssub.s32 %s19, 2
      %s32 = sadd.s32 1, %s27
      %p33 = scmp.ge.s32.totalorder %s32, 1
      %s34 = scalar_select %p33, 0, %s32
      %s35 = sadd.s32 1, %s26
      %s36 = scalar_select %p33, %s35, %s26
      %p37 = scmp.ge.s32.totalorder %s36, 2
      %s38 = scalar_select %p37, 0, %s36
      %s39 = ssub.s32 %s26, %s38
      %s40 = ssub.s32 %s27, %s34
      %s41 = sor.u32 %s39, %s40
      %p42 = scmp.eq.s32.totalorder %s41, 0
      %s44 = sadd.s32 %s43, 1
      %s45 = scalar_select %p42, %s43, %s44
      %p48 = pneg %p42
      %p49 = scmp.eq.s32.totalorder %s19, 1
      %p50 = por %p48, %p49
      %p51 = scmp.ne.s32.totalorder %s43, %s46
      %p52 = scmp.eq.s32.totalorder %s19, 0
      %p53 = por %p51, %p52
      %p54 = scmp.ne.s32.totalorder %s43, %s46
      %p55 = scmp.eq.s32.totalorder %s24, 1
      %p56 = por %p54, %p55
      %p57 = scmp.ne.s32.totalorder %s46, %s47
      %p58 = scmp.eq.s32.totalorder %s24, 0
      %p59 = por %p57, %p58
      %p60 = scmp.ne.s32.totalorder %s46, %s47
      %p61 = scmp.eq.s32.totalorder %s25, 1
      %p62 = por %p60, %p61
      %p64 = scmp.ne.s32.totalorder %s47, %s63
      %p65 = scmp.eq.s32.totalorder %s25, 0
      %p66 = por %p64, %p65
      %s67 = ssub.s32 %s26, %s38
      %p68 = scmp.eq.s32.totalorder %s67, 0
      %s70 = sadd.s32 %s69, 1
      %s71 = scalar_select %p68, %s69, %s70
      %p74 = pneg %p68
      %p75 = scmp.eq.s32.totalorder %s19, 1
      %p76 = por %p74, %p75
      %p77 = scmp.ne.s32.totalorder %s69, %s72
      %p78 = scmp.eq.s32.totalorder %s19, 0
      %p79 = por %p77, %p78
      %p80 = scmp.ne.s32.totalorder %s69, %s72
      %p81 = scmp.eq.s32.totalorder %s24, 1
      %p82 = por %p80, %p81
      %p83 = scmp.ne.s32.totalorder %s72, %s73
      %p84 = scmp.eq.s32.totalorder %s24, 0
      %p85 = por %p83, %p84
      %p86 = scmp.ne.s32.totalorder %s72, %s73
      %p87 = scmp.eq.s32.totalorder %s25, 1
      %p88 = por %p86, %p87
      %p90 = scmp.ne.s32.totalorder %s73, %s89
      %p91 = scmp.eq.s32.totalorder %s25, 0
      %p92 = por %p90, %p91
      %s94 = sadd.s32 %s93, 1
      %p97 = scmp.eq.s32.totalorder %s19, 1
      %p98 = scmp.ne.s32.totalorder %s93, %s95
      %p99 = scmp.eq.s32.totalorder %s19, 0
      %p100 = por %p98, %p99
      %p101 = scmp.ne.s32.totalorder %s93, %s95
      %p102 = scmp.eq.s32.totalorder %s24, 1
      %p103 = por %p101, %p102
      %p104 = scmp.ne.s32.totalorder %s95, %s96
      %p105 = scmp.eq.s32.totalorder %s24, 0
      %p106 = por %p104, %p105
      %p107 = scmp.ne.s32.totalorder %s95, %s96
      %p108 = scmp.eq.s32.totalorder %s25, 1
      %p109 = por %p107, %p108
      %p111 = scmp.ne.s32.totalorder %s96, %s110
      %p112 = scmp.eq.s32.totalorder %s25, 0
      %p113 = por %p111, %p112
      %s115 = sadd.s32 %s114, 1
      %p118 = scmp.eq.s32.totalorder %s19, 1
      %p119 = scmp.ne.s32.totalorder %s114, %s116
      %p120 = scmp.eq.s32.totalorder %s19, 0
      %p121 = por %p119, %p120
      %p122 = scmp.ne.s32.totalorder %s114, %s116
      %p123 = scmp.eq.s32.totalorder %s24, 1
      %p124 = por %p122, %p123
      %p125 = scmp.ne.s32.totalorder %s116, %s117
      %p126 = scmp.eq.s32.totalorder %s24, 0
      %p127 = por %p125, %p126
      %p128 = scmp.ne.s32.totalorder %s116, %s117
      %p129 = scmp.eq.s32.totalorder %s25, 1
      %p130 = por %p128, %p129
      %p132 = scmp.ne.s32.totalorder %s117, %s131
      %p133 = scmp.eq.s32.totalorder %s25, 0
      %p134 = por %p132, %p133
      %s135 = ssub.s32 %s26, %s38
      %s136 = ssub.s32 %s27, %s34
      %s137 = sor.u32 %s135, %s136
      %p138 = scmp.eq.s32.totalorder %s137, 0
      %s140 = sadd.s32 %s139, 1
      %s141 = scalar_select %p138, %s139, %s140
      %p144 = pneg %p138
      %p145 = scmp.eq.s32.totalorder %s19, 1
      %p146 = por %p144, %p145
      %p147 = scmp.ne.s32.totalorder %s139, %s142
      %p148 = scmp.eq.s32.totalorder %s19, 0
      %p149 = por %p147, %p148
      %p150 = scmp.ne.s32.totalorder %s139, %s142
      %p151 = scmp.eq.s32.totalorder %s24, 1
      %p152 = por %p150, %p151
      %p153 = scmp.ne.s32.totalorder %s142, %s143
      %p154 = scmp.eq.s32.totalorder %s24, 0
      %p155 = por %p153, %p154
      %p156 = scmp.ne.s32.totalorder %s142, %s143
      %p157 = scmp.eq.s32.totalorder %s25, 1
      %p158 = por %p156, %p157
      %p160 = scmp.ne.s32.totalorder %s143, %s159
      %p161 = scmp.eq.s32.totalorder %s25, 0
      %p162 = por %p160, %p161
      %p163 = scmp.le.s32.totalorder 1, %s19
      %p164 = scmp.lt.s32.totalorder %s19, 3
      %p165 = pnand %p163, %p164
      %p166 = pneg %p165
      // Predicated region
      $region9: #{tpu_custom_call.1} parent=5 // pred_check
        _
      $region10: #{tpu_custom_call.1} parent=5 // pred_check_branch
        %168 = sbr.rel (%p165) target = $region12
      $region11: #{tpu_custom_call.1} parent=5 // pred_region
        %s169 = ssub.s32 %s19, 1
        // Predicated region
        $region13: #{tpu_custom_call.1} parent=11 // pred_check
          %p170 = pneg %p106
        $region14: #{tpu_custom_call.1} parent=11 // pred_check_branch
          %172 = sbr.rel (%p170) target = $region16
        $region15: #{tpu_custom_call.1} parent=11 // pred_region
          %s174 = ssub.s32 256, 256
          %175 = vsyncadd [#allocation6], %s174
          %s176 = sshll.u32 [#allocation7], 4
          %s177 = int_to_ptr.vmem [resolvable:$true] %s176
          %182 = dma.hbm_to_vmem [thread:$0]  %s2, 256, %s177, [#allocation6], 64, 64, 4
        $region16: #{tpu_custom_call.1} parent=11 // pred_fallthru
          _
        // Predicated region
        $region17: #{tpu_custom_call.1} parent=11 // pred_check
          %p183 = pneg %p127
        $region18: #{tpu_custom_call.1} parent=11 // pred_check_branch
          %185 = sbr.rel (%p183) target = $region20
        $region19: #{tpu_custom_call.1} parent=11 // pred_region
          _
        $region20: #{tpu_custom_call.1} parent=11 // pred_fallthru
          _
      $region12: #{tpu_custom_call.1} parent=5 // pred_fallthru
        _
      %p186 = scmp.lt.s32.totalorder %s19, 2
      // Predicated region
      $region21: #{tpu_custom_call.1} parent=5 // pred_check
        %p187 = pneg %p186
      $region22: #{tpu_custom_call.1} parent=5 // pred_check_branch
        %189 = sbr.rel (%p187) target = $region24
      $region23: #{tpu_custom_call.1} parent=5 // pred_region
        // Predicated region
        $region25: #{tpu_custom_call.1} parent=23 // pred_check
          %p190 = pneg %p53
        $region26: #{tpu_custom_call.1} parent=23 // pred_check_branch
          %192 = sbr.rel (%p190) target = $region28
        $region27: #{tpu_custom_call.1} parent=23 // pred_region
          %s193 = sand.u32 %s43, 1
          %s194 = scalar_lea.sflag [#allocation3], %s193
          %s195 = sand.u32 %s43, 1
          %s196 = smul.addr %s195, 4
          %s197 = scalar_lea.vmem [#allocation2], %s196
          %s199 = ssub.s32 64, 64
          %200 = vsyncadd %s194, %s199
          %s201 = sadd.s32 %s27, %s26
          %s202 = smul.addr %s201, 64
          %s203 = scalar_lea.hbm %s0, %s202
          %s205 = sshll.u32 %s197, 4
          %s206 = int_to_ptr.vmem [resolvable:$true] %s205
          %208 = dma.hbm_to_vmem [thread:$0]  %s203, 64, %s206, %s194
        $region28: #{tpu_custom_call.1} parent=23 // pred_fallthru
          _
        // Predicated region
        $region29: #{tpu_custom_call.1} parent=23 // pred_check
          %p209 = pneg %p79
        $region30: #{tpu_custom_call.1} parent=23 // pred_check_branch
          %211 = sbr.rel (%p209) target = $region32
        $region31: #{tpu_custom_call.1} parent=23 // pred_region
          %s212 = sand.u32 %s19, 1
          %s213 = scalar_lea.sflag [#allocation6], %s212
          %s214 = sand.u32 %s69, 1
          %s215 = scalar_lea.vmem [#allocation5], %s214
          %s217 = ssub.s32 16, 16
          %218 = vsyncadd %s213, %s217
          %s219 = smul.addr %s26, 16
          %s220 = scalar_lea.hbm %s1, %s219
          %s222 = sshll.u32 %s215, 4
          %s223 = int_to_ptr.vmem [resolvable:$true] %s222
          %225 = dma.hbm_to_vmem [thread:$0]  %s220, 16, %s223, %s213
        $region32: #{tpu_custom_call.1} parent=23 // pred_fallthru
          _
      $region24: #{tpu_custom_call.1} parent=5 // pred_fallthru
        _
      %p226 = scmp.le.s32.totalorder 1, %s19
      %p227 = scmp.lt.s32.totalorder %s19, 3
      %p228 = pnand %p226, %p227
      %p229 = pneg %p228
      // Predicated region
      $region33: #{tpu_custom_call.1} parent=5 // pred_check
        _
      $region34: #{tpu_custom_call.1} parent=5 // pred_check_branch
        %231 = sbr.rel (%p228) target = $region36
      $region35: #{tpu_custom_call.1} parent=5 // pred_region
        %s232 = ssub.s32 %s19, 1
        %s233 = sand.u32 %s46, 1
        %s234 = scalar_lea.sflag [#allocation3], %s233
        %s235 = sand.u32 %s46, 1
        %s236 = smul.addr %s235, 4
        %s237 = scalar_lea.vmem [#allocation2], %s236
        // Predicated region
        $region37: #{tpu_custom_call.1} parent=35 // pred_check
          %p238 = pneg %p59
        $region38: #{tpu_custom_call.1} parent=35 // pred_check_branch
          %240 = sbr.rel (%p238) target = $region40
        $region39: #{tpu_custom_call.1} parent=35 // pred_region
          %241 = dma.done %s234, 64
        $region40: #{tpu_custom_call.1} parent=35 // pred_fallthru
          _
        %s242 = sand.u32 %s24, 1
        %s243 = scalar_lea.sflag [#allocation6], %s242
        %s244 = sand.u32 %s72, 1
        %s245 = scalar_lea.vmem [#allocation5], %s244
        // Predicated region
        $region41: #{tpu_custom_call.1} parent=35 // pred_check
          %p246 = pneg %p85
        $region42: #{tpu_custom_call.1} parent=35 // pred_check_branch
          %248 = sbr.rel (%p246) target = $region44
        $region43: #{tpu_custom_call.1} parent=35 // pred_region
          %249 = dma.done %s243, 16
        $region44: #{tpu_custom_call.1} parent=35 // pred_fallthru
          _
        // Predicated region
        $region45: #{tpu_custom_call.1} parent=35 // pred_check
          %p250 = pneg %p106
        $region46: #{tpu_custom_call.1} parent=35 // pred_check_branch
          %252 = sbr.rel (%p250) target = $region48
        $region47: #{tpu_custom_call.1} parent=35 // pred_region
          %253 = dma.done [#allocation6], 256
        $region48: #{tpu_custom_call.1} parent=35 // pred_fallthru
          _
        %s254 = sand.u32 %s46, 1
        %s255 = scalar_lea.sflag [#allocation3], %s254
        %s256 = sand.u32 %s46, 1
        %s257 = smul.addr %s256, 4
        %s258 = scalar_lea.vmem [#allocation2], %s257
        %p259 = pneg %p59
        %p260 = pneg %p56
        %s261 = sand.u32 %s24, 1
        %s262 = scalar_lea.sflag [#allocation6], %s261
        %s263 = sand.u32 %s72, 1
        %s264 = scalar_lea.vmem [#allocation5], %s263
        %p265 = pneg %p85
        %p266 = pneg %p82
        %p267 = pneg %p106
        %p268 = pneg %p103
        %p269 = pneg %p127
        %p270 = pneg %p124
        %p271 = pneg %p155
        %p272 = pneg %p152
        %s273 = sand.u32 %s142, 1
        %s274 = scalar_lea.sflag [#allocation4], %s273
        %s275 = sand.u32 %s142, 1
        %s276 = smul.addr %s275, 8
        %s277 = scalar_lea.vmem [#allocation8], %s276
        %v279 = vld [vmem:[%s237] sm:$0xf]
        %v280 = vld [vmem:[#allocation7] sm:$0xf]
        %v281 = vld [vmem:[#allocation7 + $0x4] sm:$0xf]
        %v282 = vld [vmem:[#allocation7 + $0x8] sm:$0xf]
        %v283 = vld [vmem:[#allocation7 + $0xc] sm:$0xf]
        %v284 = vld [vmem:[%s3] sm:$0x1]
        %v286 = vlaneseq
        %v287 = vshrl.u32 %v286, 7
        %v288 = vsub.s32 0, %v287
        %v289 = vrot.slane %v284, %v288
        %v295 = vunpack.c.l.b16 %v280
        %v296 = vunpack.c.l.b16 %v281
        %v297 = vunpack.c.l.b16 %v282
        %v298 = vunpack.c.l.b16 %v283
        %v299 = vpack.c.b16 %v296, %v295
        %v300 = vpack.c.b16 %v298, %v297
        %vm303 = vcmask 261120
        %v305 = vsel %vm303, %v279, 0
        %307 = vmatprep.subr.bf16.mxu0 0
        %308 = vmatpush1.bf16.msra.mxu0 0
        %309 = vmatprep.subr.bf16.mxu0 0
        %310 = vmatpush1.bf16.msra.mxu0 0
        %311 = vmatprep.subr.bf16.mxu0 0
        %312 = vmatpush1.bf16.msra.mxu0 0
        %313 = vmatprep.subr.bf16.mxu0 0
        %314 = vmatpush1.bf16.msra.mxu0 0
        %315 = vmatprep.subr.bf16.mxu0 0
        %316 = vmatpush1.bf16.msra.mxu0 0
        %317 = vmatprep.subr.bf16.mxu0 0
        %318 = vmatpush1.bf16.msra.mxu0 0
        %319 = vmatprep.subr.bf16.mxu0 0
        %320 = vmatpush1.bf16.msra.mxu0 %v300
        %321 = vmatprep.subr.bf16.mxu0 0
        %322 = vmatpush1.bf16.msra.mxu0 %v299
        %323 = vmatprep.subr.bf16.mxu0 0
        %324 = vmatpush2.bf16.msra.mxu0 0
        %325 = vmatprep.subr.bf16.mxu0 0
        %326 = vmatpush2.bf16.msra.mxu0 0
        %327 = vmatprep.subr.bf16.mxu0 0
        %328 = vmatpush2.bf16.msra.mxu0 0
        %329 = vmatprep.subr.bf16.mxu0 0
        %330 = vmatpush2.bf16.msra.mxu0 0
        %331 = vmatprep.subr.bf16.mxu0 0
        %332 = vmatpush2.bf16.msra.mxu0 0
        %333 = vmatprep.subr.bf16.mxu0 0
        %334 = vmatpush2.bf16.msra.mxu0 0
        %335 = vmatprep.subr.bf16.mxu0 0
        %336 = vmatpush2.bf16.msra.mxu0 0
        %337 = vmatprep.subr.bf16.mxu0 0
        %338 = vmatpush2.bf16.msra.mxu0 0
        %339 = vmatprep.mubr.bf16.mxu0 0
        %340 = vmatmul.mubr.bf16.gmra.mxu0 %v305
        %v341 = vpop.f32.mrf.mxu0
        %v342 = vadd.f32 %v289, %v341
        %v343 = vpop.f32.mrf.mxu0
        %v344 = vpop.f32.mrf.mxu0
        %v345 = vpop.f32.mrf.mxu0
        %346 = vdwg.mxu0
        %v347 = vlaneseq
        %v348 = vshrl.u32 %v347, 7
        %s349 = smul.u32 %s29, 8
        %v350 = vstv %s349
        %v351 = vadd.s32 %v348, %v350
        %v352 = vld [vmem:[%s245] sm:$0x1]
        %v353 = vlaneseq
        %v354 = vshrl.u32 %v353, 7
        %v355 = vsub.s32 0, %v354
        %v356 = vrot.slane %v352, %v355
        %vm357 = vcmp.le.s32.totalorder %v356, %v351
        %v358 = vsel %vm357, -inf, %v342
        %359 = vmax.xlane.f32.xlu0 %v358
        %v360 = vpop.xlane.xlu0 %359
        %v361 = vsub.f32 %v358, %v360
        %v362 = vmul.f32 %v361, 1.442695
        %v363 = vpow.pop %v362
        %364 = vadd.xlane.f32.xlu0 %v363
        %v365 = vpop.xlane.xlu0 %364
        %v366 = vlog2.pop %v365
        %v367 = vmul.f32 %v366, 0.6931472
        %v368 = vsub.f32 %v361, %v367
        %369 = vst [vmem:[%s277] sm:$0xff] %v368
        %s370 = sand.u32 %s142, 1
        %s371 = scalar_lea.sflag [#allocation4], %s370
        %s372 = sand.u32 %s142, 1
        %s373 = smul.addr %s372, 8
        %s374 = scalar_lea.vmem [#allocation8], %s373
        // Predicated region
        $region49: #{tpu_custom_call.1} parent=35 // pred_check
          %p375 = pneg %p152
        $region50: #{tpu_custom_call.1} parent=35 // pred_check_branch
          %377 = sbr.rel (%p375) target = $region52
        $region51: #{tpu_custom_call.1} parent=35 // pred_region
          %s379 = ssub.s32 128, 128
          %380 = vsyncadd %s371, %s379
          %s381 = sadd.s32 %s29, %s28
          %s382 = smul.addr %s381, 128
          %s383 = scalar_lea.hbm %s4, %s382
          %s385 = sshll.u32 %s374, 4
          %s386 = int_to_ptr.vmem [resolvable:$true] %s385
          %388 = dma.vmem_to_hbm [thread:$0]  %s386, 128, %s383, %s371
        $region52: #{tpu_custom_call.1} parent=35 // pred_fallthru
          _
      $region36: #{tpu_custom_call.1} parent=5 // pred_fallthru
        _
      %p389 = scmp.le.s32.totalorder 2, %s19
      // Predicated region
      $region53: #{tpu_custom_call.1} parent=5 // pred_check
        %p390 = pneg %p389
      $region54: #{tpu_custom_call.1} parent=5 // pred_check_branch
        %392 = sbr.rel (%p390) target = $region56
      $region55: #{tpu_custom_call.1} parent=5 // pred_region
        %s393 = ssub.s32 %s19, 2
        // Predicated region
        $region57: #{tpu_custom_call.1} parent=55 // pred_check
          %p394 = pneg %p158
        $region58: #{tpu_custom_call.1} parent=55 // pred_check_branch
          %396 = sbr.rel (%p394) target = $region60
        $region59: #{tpu_custom_call.1} parent=55 // pred_region
          %s397 = sand.u32 %s143, 1
          %s398 = scalar_lea.sflag [#allocation4], %s397
          %s399 = sand.u32 %s143, 1
          %s400 = smul.addr %s399, 8
          %s401 = scalar_lea.vmem [#allocation8], %s400
          %402 = dma.done %s398, 128
        $region60: #{tpu_custom_call.1} parent=55 // pred_fallthru
          _
      $region56: #{tpu_custom_call.1} parent=5 // pred_fallthru
        _
    $region6: #{tpu_custom_call.1} parent=1 // loop_footer
      %s23 = sadd.s32 1, %s19
    $region7: #{tpu_custom_call.1} parent=1 // loop_footer_branch
      %18 = sbr.rel target = $region3
    $region8: #{tpu_custom_call.1} parent=1 // loop_exit
      _
    %403 = vsyncpa [#allocation3], 1
    %s404 = scalar_lea.sflag [#allocation3], 1
    %405 = vsyncpa %s404, 1
    %406 = vsyncpa [#allocation6], 1
    %s407 = scalar_lea.sflag [#allocation6], 1
    %408 = vsyncpa %s407, 1
    %409 = vsyncpa [#allocation4], 1
    %s410 = scalar_lea.sflag [#allocation4], 1
    %411 = vsyncpa %s410, 1

// kernel: tpu_custom_call.1
$region0: #{tpu_custom_call.1}
  #allocation0 [shape = 'u32[]', space=smem, size = 0x4, offset = 0x4, fixed_abs, tag = 'smem constant byte address 0x4 - core index']
  #allocation1 [shape = 'u32[144,128]{1,0:T(1,128)}', space=vmem, size = 0x12000, scoped, tag = 'internal scratch']
  %s0 = inlined_call_operand.hbm [shape: bf16[2,8,32], index: 0, kind: input, shape index: {}]
  %s1 = inlined_call_operand.hbm [shape: s32[2,1,128], index: 1, kind: input, shape index: {}]
  %s2 = inlined_call_operand.hbm [shape: bf16[32,128], index: 2, kind: input, shape index: {}]
  %s3 = inlined_call_operand.vmem [shape: f32[1,128], index: 3, kind: input, shape index: {}]
  %s4 = inlined_call_operand.hbm [shape: f32[2,8,128], index: 4, kind: output, shape index: {}]
  %s5 = sld [smem:[#allocation0]]
  $region61: #{tpu_custom_call.1} parent=0
    _
  %s7 = ssub.s32 1, %s5
  %s8 = scalar_select 0, %s7, %s5
  $region1: #{tpu_custom_call.1} parent=0
    #allocation2 [shape = 'u8[4096]{0}', space=vmem, size = 0x1000, scoped, tag = 'input window, operand 0']
    #allocation3 [shape = 's32[2]{0}', space=sflag, size = 0x8, scoped, tag = 'scoped memory for tpu_custom_call.1']
    #allocation4 [shape = 's32[2]{0}', space=sflag, size = 0x8, scoped, tag = 'scoped memory for tpu_custom_call.1']
    #allocation5 [shape = 'u8[1024]{0}', space=vmem, size = 0x400, scoped, tag = 'input window, operand 1']
    #allocation6 [shape = 's32[2]{0}', space=sflag, size = 0x8, scoped, tag = 'scoped memory for tpu_custom_call.1']
    #allocation7 [shape = 'u8[8192]{0}', space=vmem, size = 0x2000, scoped, tag = 'input window, operand 2, single buffered']
    #allocation8 [shape = 'u8[8192]{0}', space=vmem, size = 0x2000, scoped, tag = 'output window, operand 0']
    %9 = vsyncpa [#allocation3], 0
    %s10 = scalar_lea.sflag [#allocation3], 1
    %11 = vsyncpa %s10, 0
    %12 = vsyncpa [#allocation6], 0
    %s13 = scalar_lea.sflag [#allocation6], 1
    %14 = vsyncpa %s13, 0
    %15 = vsyncpa [#allocation4], 0
    %s16 = scalar_lea.sflag [#allocation4], 1
    %17 = vsyncpa %s16, 0
    loop: start=0, step=1, limit=4
    $region2: #{tpu_custom_call.1} parent=1 // loop_pre_header
      _
    $region3: #{tpu_custom_call.1} parent=1 // loop_header
      %s19 = sphi 0, %s23
      %p20 = scmp.ge.s32.totalorder %s19, 4
      %s26 = sphi 0, %s38
      %s27 = sphi 0, %s34
      %s28 = sphi 0, %s26
      %s29 = sphi 0, %s27
      %s30 = sphi 0, %s28
      %s31 = sphi 0, %s29
      %s43 = sphi 0, %s45
      %s46 = sphi 0, %s43
      %s47 = sphi 0, %s46
      %s63 = sphi 0, %s47
      %s69 = sphi 0, %s71
      %s72 = sphi 0, %s69
      %s73 = sphi 0, %s72
      %s89 = sphi 0, %s73
      %s93 = sphi 0, %s93
      %s95 = sphi 0, %s93
      %s96 = sphi 0, %s95
      %s110 = sphi 0, %s96
      %s114 = sphi 0, %s114
      %s116 = sphi 0, %s114
      %s117 = sphi 0, %s116
      %s131 = sphi 0, %s117
      %s139 = sphi 0, %s141
      %s142 = sphi 0, %s139
      %s143 = sphi 0, %s142
      %s159 = sphi 0, %s143
    $region4: #{tpu_custom_call.1} parent=1 // loop_header_branch
      %22 = sbr.rel (%p20) target = $region8
    $region5: #{tpu_custom_call.1} parent=1 // loop_body
      %s24 = ssub.s32 %s19, 1
      %s25 = ssub.s32 %s19, 2
      %s32 = sadd.s32 1, %s27
      %p33 = scmp.ge.s32.totalorder %s32, 1
      %s34 = scalar_select %p33, 0, %s32
      %s35 = sadd.s32 1, %s26
      %s36 = scalar_select %p33, %s35, %s26
      %p37 = scmp.ge.s32.totalorder %s36, 2
      %s38 = scalar_select %p37, 0, %s36
      %s39 = ssub.s32 %s26, %s38
      %s40 = ssub.s32 %s27, %s34
      %s41 = sor.u32 %s39, %s40
      %p42 = scmp.eq.s32.totalorder %s41, 0
      %s44 = sadd.s32 %s43, 1
      %s45 = scalar_select %p42, %s43, %s44
      %p48 = pneg %p42
      %p49 = scmp.eq.s32.totalorder %s19, 1
      %p50 = por %p48, %p49
      %p51 = scmp.ne.s32.totalorder %s43, %s46
      %p52 = scmp.eq.s32.totalorder %s19, 0
      %p53 = por %p51, %p52
      %p54 = scmp.ne.s32.totalorder %s43, %s46
      %p55 = scmp.eq.s32.totalorder %s24, 1
      %p56 = por %p54, %p55
      %p57 = scmp.ne.s32.totalorder %s46, %s47
      %p58 = scmp.eq.s32.totalorder %s24, 0
      %p59 = por %p57, %p58
      %p60 = scmp.ne.s32.totalorder %s46, %s47
      %p61 = scmp.eq.s32.totalorder %s25, 1
      %p62 = por %p60, %p61
      %p64 = scmp.ne.s32.totalorder %s47, %s63
      %p65 = scmp.eq.s32.totalorder %s25, 0
      %p66 = por %p64, %p65
      %s67 = ssub.s32 %s26, %s38
      %p68 = scmp.eq.s32.totalorder %s67, 0
      %s70 = sadd.s32 %s69, 1
      %s71 = scalar_select %p68, %s69, %s70
      %p74 = pneg %p68
      %p75 = scmp.eq.s32.totalorder %s19, 1
      %p76 = por %p74, %p75
      %p77 = scmp.ne.s32.totalorder %s69, %s72
      %p78 = scmp.eq.s32.totalorder %s19, 0
      %p79 = por %p77, %p78
      %p80 = scmp.ne.s32.totalorder %s69, %s72
      %p81 = scmp.eq.s32.totalorder %s24, 1
      %p82 = por %p80, %p81
      %p83 = scmp.ne.s32.totalorder %s72, %s73
      %p84 = scmp.eq.s32.totalorder %s24, 0
      %p85 = por %p83, %p84
      %p86 = scmp.ne.s32.totalorder %s72, %s73
      %p87 = scmp.eq.s32.totalorder %s25, 1
      %p88 = por %p86, %p87
      %p90 = scmp.ne.s32.totalorder %s73, %s89
      %p91 = scmp.eq.s32.totalorder %s25, 0
      %p92 = por %p90, %p91
      %s94 = sadd.s32 %s93, 1
      %p97 = scmp.eq.s32.totalorder %s19, 1
      %p98 = scmp.ne.s32.totalorder %s93, %s95
      %p99 = scmp.eq.s32.totalorder %s19, 0
      %p100 = por %p98, %p99
      %p101 = scmp.ne.s32.totalorder %s93, %s95
      %p102 = scmp.eq.s32.totalorder %s24, 1
      %p103 = por %p101, %p102
      %p104 = scmp.ne.s32.totalorder %s95, %s96
      %p105 = scmp.eq.s32.totalorder %s24, 0
      %p106 = por %p104, %p105
      %p107 = scmp.ne.s32.totalorder %s95, %s96
      %p108 = scmp.eq.s32.totalorder %s25, 1
      %p109 = por %p107, %p108
      %p111 = scmp.ne.s32.totalorder %s96, %s110
      %p112 = scmp.eq.s32.totalorder %s25, 0
      %p113 = por %p111, %p112
      %s115 = sadd.s32 %s114, 1
      %p118 = scmp.eq.s32.totalorder %s19, 1
      %p119 = scmp.ne.s32.totalorder %s114, %s116
      %p120 = scmp.eq.s32.totalorder %s19, 0
      %p121 = por %p119, %p120
      %p122 = scmp.ne.s32.totalorder %s114, %s116
      %p123 = scmp.eq.s32.totalorder %s24, 1
      %p124 = por %p122, %p123
      %p125 = scmp.ne.s32.totalorder %s116, %s117
      %p126 = scmp.eq.s32.totalorder %s24, 0
      %p127 = por %p125, %p126
      %p128 = scmp.ne.s32.totalorder %s116, %s117
      %p129 = scmp.eq.s32.totalorder %s25, 1
      %p130 = por %p128, %p129
      %p132 = scmp.ne.s32.totalorder %s117, %s131
      %p133 = scmp.eq.s32.totalorder %s25, 0
      %p134 = por %p132, %p133
      %s135 = ssub.s32 %s26, %s38
      %s136 = ssub.s32 %s27, %s34
      %s137 = sor.u32 %s135, %s136
      %p138 = scmp.eq.s32.totalorder %s137, 0
      %s140 = sadd.s32 %s139, 1
      %s141 = scalar_select %p138, %s139, %s140
      %p144 = pneg %p138
      %p145 = scmp.eq.s32.totalorder %s19, 1
      %p146 = por %p144, %p145
      %p147 = scmp.ne.s32.totalorder %s139, %s142
      %p148 = scmp.eq.s32.totalorder %s19, 0
      %p149 = por %p147, %p148
      %p150 = scmp.ne.s32.totalorder %s139, %s142
      %p151 = scmp.eq.s32.totalorder %s24, 1
      %p152 = por %p150, %p151
      %p153 = scmp.ne.s32.totalorder %s142, %s143
      %p154 = scmp.eq.s32.totalorder %s24, 0
      %p155 = por %p153, %p154
      %p156 = scmp.ne.s32.totalorder %s142, %s143
      %p157 = scmp.eq.s32.totalorder %s25, 1
      %p158 = por %p156, %p157
      %p160 = scmp.ne.s32.totalorder %s143, %s159
      %p161 = scmp.eq.s32.totalorder %s25, 0
      %p162 = por %p160, %p161
      %p163 = scmp.le.s32.totalorder 1, %s19
      %p164 = scmp.lt.s32.totalorder %s19, 3
      %p165 = pnand %p163, %p164
      %p166 = pneg %p165
      // Predicated region
      $region9: #{tpu_custom_call.1} parent=5 // pred_check
        _
      $region10: #{tpu_custom_call.1} parent=5 // pred_check_branch
        %168 = sbr.rel (%p165) target = $region12
      $region11: #{tpu_custom_call.1} parent=5 // pred_region
        %s169 = ssub.s32 %s19, 1
        // Predicated region
        $region13: #{tpu_custom_call.1} parent=11 // pred_check
          %p170 = pneg %p106
        $region14: #{tpu_custom_call.1} parent=11 // pred_check_branch
          %172 = sbr.rel (%p170) target = $region16
        $region15: #{tpu_custom_call.1} parent=11 // pred_region
          %s174 = ssub.s32 256, 256
          %175 = vsyncadd [#allocation6], %s174
          %s176 = sshll.u32 [#allocation7], 4
          %s177 = int_to_ptr.vmem [resolvable:$true] %s176
          %182 = dma.hbm_to_vmem [thread:$0]  %s2, 256, %s177, [#allocation6], 64, 64, 4
        $region16: #{tpu_custom_call.1} parent=11 // pred_fallthru
          _
        // Predicated region
        $region17: #{tpu_custom_call.1} parent=11 // pred_check
          %p183 = pneg %p127
        $region18: #{tpu_custom_call.1} parent=11 // pred_check_branch
          %185 = sbr.rel (%p183) target = $region20
        $region19: #{tpu_custom_call.1} parent=11 // pred_region
          _
        $region20: #{tpu_custom_call.1} parent=11 // pred_fallthru
          _
      $region12: #{tpu_custom_call.1} parent=5 // pred_fallthru
        _
      %p186 = scmp.lt.s32.totalorder %s19, 2
      // Predicated region
      $region21: #{tpu_custom_call.1} parent=5 // pred_check
        %p187 = pneg %p186
      $region22: #{tpu_custom_call.1} parent=5 // pred_check_branch
        %189 = sbr.rel (%p187) target = $region24
      $region23: #{tpu_custom_call.1} parent=5 // pred_region
        // Predicated region
        $region25: #{tpu_custom_call.1} parent=23 // pred_check
          %p190 = pneg %p53
        $region26: #{tpu_custom_call.1} parent=23 // pred_check_branch
          %192 = sbr.rel (%p190) target = $region28
        $region27: #{tpu_custom_call.1} parent=23 // pred_region
          %s193 = sand.u32 %s43, 1
          %s194 = scalar_lea.sflag [#allocation3], %s193
          %s195 = sand.u32 %s43, 1
          %s196 = smul.addr %s195, 4
          %s197 = scalar_lea.vmem [#allocation2], %s196
          %s199 = ssub.s32 64, 64
          %200 = vsyncadd %s194, %s199
          %s201 = sadd.s32 %s27, %s26
          %s202 = smul.addr %s201, 64
          %s203 = scalar_lea.hbm %s0, %s202
          %s205 = sshll.u32 %s197, 4
          %s206 = int_to_ptr.vmem [resolvable:$true] %s205
          %208 = dma.hbm_to_vmem [thread:$0]  %s203, 64, %s206, %s194
        $region28: #{tpu_custom_call.1} parent=23 // pred_fallthru
          _
        // Predicated region
        $region29: #{tpu_custom_call.1} parent=23 // pred_check
          %p209 = pneg %p79
        $region30: #{tpu_custom_call.1} parent=23 // pred_check_branch
          %211 = sbr.rel (%p209) target = $region32
        $region31: #{tpu_custom_call.1} parent=23 // pred_region
          %s212 = sand.u32 %s19, 1
          %s213 = scalar_lea.sflag [#allocation6], %s212
          %s214 = sand.u32 %s69, 1
          %s215 = scalar_lea.vmem [#allocation5], %s214
          %s217 = ssub.s32 16, 16
          %218 = vsyncadd %s213, %s217
          %s219 = smul.addr %s26, 16
          %s220 = scalar_lea.hbm %s1, %s219
          %s222 = sshll.u32 %s215, 4
          %s223 = int_to_ptr.vmem [resolvable:$true] %s222
          %225 = dma.hbm_to_vmem [thread:$0]  %s220, 16, %s223, %s213
        $region32: #{tpu_custom_call.1} parent=23 // pred_fallthru
          _
      $region24: #{tpu_custom_call.1} parent=5 // pred_fallthru
        _
      %p226 = scmp.le.s32.totalorder 1, %s19
      %p227 = scmp.lt.s32.totalorder %s19, 3
      %p228 = pnand %p226, %p227
      %p229 = pneg %p228
      // Predicated region
      $region33: #{tpu_custom_call.1} parent=5 // pred_check
        _
      $region34: #{tpu_custom_call.1} parent=5 // pred_check_branch
        %231 = sbr.rel (%p228) target = $region36
      $region35: #{tpu_custom_call.1} parent=5 // pred_region
        %s232 = ssub.s32 %s19, 1
        %s233 = sand.u32 %s46, 1
        %s234 = scalar_lea.sflag [#allocation3], %s233
        %s235 = sand.u32 %s46, 1
        %s236 = smul.addr %s235, 4
        %s237 = scalar_lea.vmem [#allocation2], %s236
        // Predicated region
        $region37: #{tpu_custom_call.1} parent=35 // pred_check
          %p238 = pneg %p59
        $region38: #{tpu_custom_call.1} parent=35 // pred_check_branch
          %240 = sbr.rel (%p238) target = $region40
        $region39: #{tpu_custom_call.1} parent=35 // pred_region
          %241 = dma.done %s234, 64
        $region40: #{tpu_custom_call.1} parent=35 // pred_fallthru
          _
        %s242 = sand.u32 %s24, 1
        %s243 = scalar_lea.sflag [#allocation6], %s242
        %s244 = sand.u32 %s72, 1
        %s245 = scalar_lea.vmem [#allocation5], %s244
        // Predicated region
        $region41: #{tpu_custom_call.1} parent=35 // pred_check
          %p246 = pneg %p85
        $region42: #{tpu_custom_call.1} parent=35 // pred_check_branch
          %248 = sbr.rel (%p246) target = $region44
        $region43: #{tpu_custom_call.1} parent=35 // pred_region
          %249 = dma.done %s243, 16
        $region44: #{tpu_custom_call.1} parent=35 // pred_fallthru
          _
        // Predicated region
        $region45: #{tpu_custom_call.1} parent=35 // pred_check
          %p250 = pneg %p106
        $region46: #{tpu_custom_call.1} parent=35 // pred_check_branch
          %252 = sbr.rel (%p250) target = $region48
        $region47: #{tpu_custom_call.1} parent=35 // pred_region
          %253 = dma.done [#allocation6], 256
        $region48: #{tpu_custom_call.1} parent=35 // pred_fallthru
          _
        %s254 = sand.u32 %s46, 1
        %s255 = scalar_lea.sflag [#allocation3], %s254
        %s256 = sand.u32 %s46, 1
        %s257 = smul.addr %s256, 4
        %s258 = scalar_lea.vmem [#allocation2], %s257
        %p259 = pneg %p59
        %p260 = pneg %p56
        %s261 = sand.u32 %s24, 1
        %s262 = scalar_lea.sflag [#allocation6], %s261
        %s263 = sand.u32 %s72, 1
        %s264 = scalar_lea.vmem [#allocation5], %s263
        %p265 = pneg %p85
        %p266 = pneg %p82
        %p267 = pneg %p106
        %p268 = pneg %p103
        %p269 = pneg %p127
        %p270 = pneg %p124
        %p271 = pneg %p155
        %p272 = pneg %p152
        %s273 = sand.u32 %s142, 1
        %s274 = scalar_lea.sflag [#allocation4], %s273
        %s275 = sand.u32 %s142, 1
        %s276 = smul.addr %s275, 8
        %s277 = scalar_lea.vmem [#allocation8], %s276
        %v279 = vld [vmem:[%s237] sm:$0xf]
        %v280 = vld [vmem:[#allocation7] sm:$0xf]
        %v281 = vld [vmem:[#allocation7 + $0x4] sm:$0xf]
        %v282 = vld [vmem:[#allocation7 + $0x8] sm:$0xf]
        %v283 = vld [vmem:[#allocation7 + $0xc] sm:$0xf]
        %v284 = vld [vmem:[%s3] sm:$0x1]
        %v286 = vlaneseq
        %v287 = vshrl.u32 %v286, 7
        %v288 = vsub.s32 0, %v287
        %v289 = vrot.slane %v284, %v288
        %v295 = vunpack.c.l.b16 %v280
        %v296 = vunpack.c.l.b16 %v281
        %v297 = vunpack.c.l.b16 %v282
        %v298 = vunpack.c.l.b16 %v283
        %v299 = vpack.c.b16 %v296, %v295
        %v300 = vpack.c.b16 %v298, %v297
        %vm303 = vcmask 261120
        %v305 = vsel %vm303, %v279, 0
        %307 = vmatprep.subr.bf16.mxu0 0
        %308 = vmatpush1.bf16.msra.mxu0 0
        %309 = vmatprep.subr.bf16.mxu0 0
        %310 = vmatpush1.bf16.msra.mxu0 0
        %311 = vmatprep.subr.bf16.mxu0 0
        %312 = vmatpush1.bf16.msra.mxu0 0
        %313 = vmatprep.subr.bf16.mxu0 0
        %314 = vmatpush1.bf16.msra.mxu0 0
        %315 = vmatprep.subr.bf16.mxu0 0
        %316 = vmatpush1.bf16.msra.mxu0 0
        %317 = vmatprep.subr.bf16.mxu0 0
        %318 = vmatpush1.bf16.msra.mxu0 0
        %319 = vmatprep.subr.bf16.mxu0 0
        %320 = vmatpush1.bf16.msra.mxu0 %v300
        %321 = vmatprep.subr.bf16.mxu0 0
        %322 = vmatpush1.bf16.msra.mxu0 %v299
        %323 = vmatprep.subr.bf16.mxu0 0
        %324 = vmatpush2.bf16.msra.mxu0 0
        %325 = vmatprep.subr.bf16.mxu0 0
        %326 = vmatpush2.bf16.msra.mxu0 0
        %327 = vmatprep.subr.bf16.mxu0 0
        %328 = vmatpush2.bf16.msra.mxu0 0
        %329 = vmatprep.subr.bf16.mxu0 0
        %330 = vmatpush2.bf16.msra.mxu0 0
        %331 = vmatprep.subr.bf16.mxu0 0
        %332 = vmatpush2.bf16.msra.mxu0 0
        %333 = vmatprep.subr.bf16.mxu0 0
        %334 = vmatpush2.bf16.msra.mxu0 0
        %335 = vmatprep.subr.bf16.mxu0 0
        %336 = vmatpush2.bf16.msra.mxu0 0
        %337 = vmatprep.subr.bf16.mxu0 0
        %338 = vmatpush2.bf16.msra.mxu0 0
        %339 = vmatprep.mubr.bf16.mxu0 0
        %340 = vmatmul.mubr.bf16.gmra.mxu0 %v305
        %v341 = vpop.f32.mrf.mxu0
        %v342 = vadd.f32 %v289, %v341
        %v343 = vpop.f32.mrf.mxu0
        %v344 = vpop.f32.mrf.mxu0
        %v345 = vpop.f32.mrf.mxu0
        %346 = vdwg.mxu0
        %v347 = vlaneseq
        %v348 = vshrl.u32 %v347, 7
        %s349 = smul.u32 %s29, 8
        %v350 = vstv %s349
        %v351 = vadd.s32 %v348, %v350
        %v352 = vld [vmem:[%s245] sm:$0x1]
        %v353 = vlaneseq
        %v354 = vshrl.u32 %v353, 7
        %v355 = vsub.s32 0, %v354
        %v356 = vrot.slane %v352, %v355
        %vm357 = vcmp.le.s32.totalorder %v356, %v351
        %v358 = vsel %vm357, -inf, %v342
        %359 = vmax.xlane.f32.xlu0 %v358
        %v360 = vpop.xlane.xlu0 %359
        %v361 = vsub.f32 %v358, %v360
        %v362 = vmul.f32 %v361, 1.442695
        %v363 = vpow.pop %v362
        %364 = vadd.xlane.f32.xlu0 %v363
        %v365 = vpop.xlane.xlu0 %364
        %v366 = vlog2.pop %v365
        %v367 = vmul.f32 %v366, 0.6931472
        %v368 = vsub.f32 %v361, %v367
        %369 = vst [vmem:[%s277] sm:$0xff] %v368
        %s370 = sand.u32 %s142, 1
        %s371 = scalar_lea.sflag [#allocation4], %s370
        %s372 = sand.u32 %s142, 1
        %s373 = smul.addr %s372, 8
        %s374 = scalar_lea.vmem [#allocation8], %s373
        // Predicated region
        $region49: #{tpu_custom_call.1} parent=35 // pred_check
          %p375 = pneg %p152
        $region50: #{tpu_custom_call.1} parent=35 // pred_check_branch
          %377 = sbr.rel (%p375) target = $region52
        $region51: #{tpu_custom_call.1} parent=35 // pred_region
          %s379 = ssub.s32 128, 128
          %380 = vsyncadd %s371, %s379
          %s381 = sadd.s32 %s29, %s28
          %s382 = smul.addr %s381, 128
          %s383 = scalar_lea.hbm %s4, %s382
          %s385 = sshll.u32 %s374, 4
          %s386 = int_to_ptr.vmem [resolvable:$true] %s385
          %388 = dma.vmem_to_hbm [thread:$0]  %s386, 128, %s383, %s371
        $region52: #{tpu_custom_call.1} parent=35 // pred_fallthru
          _
      $region36: #{tpu_custom_call.1} parent=5 // pred_fallthru
        _
      %p389 = scmp.le.s32.totalorder 2, %s19
      // Predicated region
      $region53: #{tpu_custom_call.1} parent=5 // pred_check
        %p390 = pneg %p389
      $region54: #{tpu_custom_call.1} parent=5 // pred_check_branch
        %392 = sbr.rel (%p390) target = $region56
      $region55: #{tpu_custom_call.1} parent=5 // pred_region
        %s393 = ssub.s32 %s19, 2
        // Predicated region
        $region57: #{tpu_custom_call.1} parent=55 // pred_check
          %p394 = pneg %p158
        $region58: #{tpu_custom_call.1} parent=55 // pred_check_branch
          %396 = sbr.rel (%p394) target = $region60
        $region59: #{tpu_custom_call.1} parent=55 // pred_region
          %s397 = sand.u32 %s143, 1
          %s398 = scalar_lea.sflag [#allocation4], %s397
          %s399 = sand.u32 %s143, 1
          %s400 = smul.addr %s399, 8
          %s401 = scalar_lea.vmem [#allocation8], %s400
          %402 = dma.done %s398, 128
        $region60: #{tpu_custom_call.1} parent=55 // pred_fallthru
          _
      $region56: #{tpu_custom_call.1} parent=5 // pred_fallthru
        _
    $region6: #{tpu_custom_call.1} parent=1 // loop_footer
      %s23 = sadd.s32 1, %s19
    $region7: #{tpu_custom_call.1} parent=1 // loop_footer_branch
      %18 = sbr.rel target = $region3
    $region8: #{tpu_custom_call.1} parent=1 // loop_exit
      _
    %403 = vsyncpa [#allocation3], 1
    %s404 = scalar_lea.sflag [#allocation3], 1
    %405 = vsyncpa %s404, 1
    %406 = vsyncpa [#allocation6], 1
    %s407 = scalar_lea.sflag [#allocation6], 1
    %408 = vsyncpa %s407, 1
    %409 = vsyncpa [#allocation4], 1
    %s410 = scalar_lea.sflag [#allocation4], 1
    %411 = vsyncpa %s410, 1

</llo_original>
